<compile_context>
chip_gen: v6e
topology: v6e:2x2x1
jax: 0.10.0
libtpu: 0.0.40
codegen_flags: <defaults>
</compile_context>

<pallas_src>
import functools

import jax
import jax.numpy as jnp
from jax.experimental import pallas as pl
from jax.experimental.pallas import tpu as pltpu

_LANES = 128
_ACC_ROWS = 8                 # accumulator / output tile = one f32 vreg (8, 128)
_MAX_BLOCK_ROWS = 2048        # (2048, 128) f32 block = 1 MiB per buffer
_CLAMP = 100.0                # torch.nn.BCELoss clamps log() at -100


def _round_up(n, m):
    return ((n + m - 1) // m) * m


def _cdiv(a, b):
    return -(-a // b)


def _sublane_multiple(dtype):
    # f32 -> 8, bf16 -> 16, int8/fp8 -> 32 minimum sublane tiling.
    return max(8, 32 // jnp.dtype(dtype).itemsize)


def _num_tc_splits():
    """2-way grid split only where it maps to two TensorCores (v7x)."""
    try:
        kind = jax.devices()[0].device_kind.lower()
    except Exception:
        return 1
    return 2 if "v7" in kind else 1


def _accumulate(x_ref, out_ref, *, target_one, rows, block_rows, needs_mask, inner):
    """Add this block's clamped BCE-vs-constant-target terms into out_ref (8,128)."""
    x = x_ref[...].astype(jnp.float32)
    if target_one:
        # BCE(x, 1) = -log(x), clamped like torch (log >= -100).
        term = jnp.minimum(-jnp.log(x), _CLAMP)
    else:
        # BCE(x, 0) = -log(1 - x), clamped.  Single EUP op; error vs. log1p form
        # is < ~1e-7 abs per element for x in [0, 1].
        term = jnp.minimum(-jnp.log(1.0 - x), _CLAMP)

    def vreg_sum(t):
        # (block_rows, 128) -> (block_rows/8, 8, 128) summed over the leading
        # axis: pure VPU adds into one (8, 128) vreg, no XLU reduction.
        return jnp.sum(t.reshape(-1, _ACC_ROWS, _LANES), axis=0)

    if not needs_mask:
        out_ref[...] += vreg_sum(term)
        return

    logical_blk = pl.program_id(0) * inner + pl.program_id(1)
    blk_start = logical_blk * block_rows

    @pl.when(blk_start + block_rows <= rows)
    def _():  # fast path: fully in-range block, no masking work
        out_ref[...] += vreg_sum(term)

    @pl.when(blk_start + block_rows > rows)
    def _():  # tail block (or fully duplicated over-cover block): mask rows
        rid = jax.lax.broadcasted_iota(jnp.int32, term.shape, 0)
        in_range = (blk_start + rid) < rows
        # where() discards any NaN/Inf produced by garbage OOB rows.
        out_ref[...] += vreg_sum(jnp.where(in_range, term, 0.0))


def _fused_bce_kernel(pos_ref, neg_ref, pos_out, neg_out, *, inner, pos_cfg, neg_cfg):
    i = pl.program_id(1)

    @pl.when(i == 0)
    def _():
        pos_out[...] = jnp.zeros_like(pos_out)
        neg_out[...] = jnp.zeros_like(neg_out)

    _accumulate(pos_ref, pos_out, target_one=True, inner=inner, **pos_cfg)
    _accumulate(neg_ref, neg_out, target_one=False, inner=inner, **neg_cfg)


def _lane2d(x, neutral):
    """View x lane-dense as (rows, 128): free ravel/reshape + <=127 neutral pads."""
    n = x.size
    flat = jnp.ravel(x)
    pad = (-n) % _LANES
    if pad:
        flat = jnp.pad(flat, (0, pad), constant_values=neutral)
    return flat.reshape(-1, _LANES), n


def _block_cfg(rows, total_blocks, sublane):
    block_rows = _round_up(_cdiv(rows, total_blocks), sublane)
    n_cov = _cdiv(rows, block_rows)          # real covering blocks (<= total_blocks)
    cfg = dict(rows=rows, block_rows=block_rows,
               needs_mask=(total_blocks * block_rows != rows))
    return cfg, n_cov


@functools.partial(jax.jit, static_argnames=("max_block_rows", "force_split"))
def my_loss(positive_seq, negative_seq, *, max_block_rows=_MAX_BLOCK_ROWS,
            force_split=None):
    """JAX/Pallas equivalent of MyLoss.forward. Returns a float32 scalar."""
    pos2d, n_pos = _lane2d(positive_seq, neutral=1.0)   # -log(1)     == 0
    neg2d, n_neg = _lane2d(negative_seq, neutral=0.0)   # -log(1 - 0) == 0
    rows_p, rows_n = pos2d.shape[0], neg2d.shape[0]

    nsplit = force_split if force_split is not None else _num_tc_splits()
    nsplit = max(1, min(int(nsplit), 2))

    # Enough covering blocks so the larger input's block stays <= max_block_rows.
    need = max(_cdiv(rows_p, max_block_rows), _cdiv(rows_n, max_block_rows), 1)
    inner = _cdiv(need, nsplit)
    total_blocks = nsplit * inner

    pos_cfg, n_cov_p = _block_cfg(rows_p, total_blocks, _sublane_multiple(pos2d.dtype))
    neg_cfg, n_cov_n = _block_cfg(rows_n, total_blocks, _sublane_multiple(neg2d.dtype))

    def make_in_map(n_cov):
        last = n_cov - 1
        # Clamp so an over-covering grid never indexes past the last real block;
        # the in-kernel tail mask zeroes any duplicated contribution.
        return lambda c, i: (jnp.minimum(c * inner + i, last), 0)

    kernel = functools.partial(_fused_bce_kernel, inner=inner,
                               pos_cfg=pos_cfg, neg_cfg=neg_cfg)

    out_shape = jax.ShapeDtypeStruct((nsplit * _ACC_ROWS, _LANES), jnp.float32)
    pos_part, neg_part = pl.pallas_call(
        kernel,
        out_shape=(out_shape, out_shape),
        grid_spec=pltpu.PrefetchScalarGridSpec(
            num_scalar_prefetch=0,
            grid=(nsplit, inner),
            in_specs=[
                pl.BlockSpec((pos_cfg["block_rows"], _LANES), make_in_map(n_cov_p)),
                pl.BlockSpec((neg_cfg["block_rows"], _LANES), make_in_map(n_cov_n)),
            ],
            out_specs=[
                pl.BlockSpec((_ACC_ROWS, _LANES), lambda c, i: (c, 0)),
                pl.BlockSpec((_ACC_ROWS, _LANES), lambda c, i: (c, 0)),
            ],
        ),
        compiler_params=pltpu.CompilerParams(
            dimension_semantics=("parallel", "arbitrary")),
        cost_estimate=pl.CostEstimate(
            flops=5 * (n_pos + n_neg),
            transcendentals=n_pos + n_neg,
            bytes_accessed=(pos2d.size * pos2d.dtype.itemsize
                            + neg2d.size * neg2d.dtype.itemsize
                            + 2 * nsplit * _ACC_ROWS * _LANES * 4)),
    )(pos2d, neg2d)

    # Each split left its (8,128) partial in its own output block; the tiny final
    # cross-lane sums and the means happen here in the wrapper.
    return jnp.sum(pos_part) / n_pos + jnp.sum(neg_part) / n_neg


def _reference_loss(positive_seq, negative_seq):
    """Pure-JAX reference mirroring torch.nn.BCELoss semantics."""
    pos_term = jnp.minimum(-jnp.log(positive_seq.astype(jnp.float32)), _CLAMP)
    neg_term = jnp.minimum(-jnp.log1p(-negative_seq.astype(jnp.float32)), _CLAMP)
    return jnp.mean(pos_term) + jnp.mean(neg_term)


if __name__ == "__main__":
    key = jax.random.PRNGKey(0)
    k1, k2, k3, k4 = jax.random.split(key, 4)

    # Primary example: small shapes consistent with "sequences of probabilities".
    shape = (2, 4, 16, 16)
    positive_seq = jax.random.uniform(k1, shape, jnp.float32, 1e-4, 1.0 - 1e-4)
    negative_seq = jax.random.uniform(k2, shape, jnp.float32, 1e-4, 1.0 - 1e-4)

    loss = my_loss(positive_seq, negative_seq)
    jax.block_until_ready(loss)
    ref = _reference_loss(positive_seq, negative_seq)
    assert jnp.allclose(loss, ref, rtol=1e-5, atol=1e-5), (loss, ref)

    # Secondary check: unequal sizes + ragged (non-multiple-of-128) tails, with a
    # small forced block size and a forced 2-way split so the multi-block /
    # tail-mask / duplicated-block paths are exercised even at tiny test shapes.
    pos2 = jax.random.uniform(k3, (3, 40, 50), jnp.float32, 1e-4, 1.0 - 1e-4)
    neg2 = jax.random.uniform(k4, (7, 300), jnp.float32, 1e-4, 1.0 - 1e-4)
    loss2 = my_loss(pos2, neg2, max_block_rows=16, force_split=2)
    jax.block_until_ready(loss2)
    ref2 = _reference_loss(pos2, neg2)
    assert jnp.allclose(loss2, ref2, rtol=1e-5, atol=1e-5), (loss2, ref2)

    print("KERNEL_OK")
</pallas_src>

<mosaic_0001>
module attributes {stable_mosaic.version = 11 : i64} {
  func.func @_fused_bce_kernel(%arg0: i32, %arg1: i32, %arg2: memref<16x128xf32, #tpu.memory_space<vmem>>, %arg3: memref<16x128xf32, #tpu.memory_space<vmem>>, %arg4: memref<8x128xf32, #tpu.memory_space<vmem>>, %arg5: memref<8x128xf32, #tpu.memory_space<vmem>>) attributes {dimension_semantics = [#tpu.dimension_semantics<parallel>, #tpu.dimension_semantics<arbitrary>], iteration_bounds = array<i64: 1, 1>, scalar_prefetch = 0 : i64, scratch_operands = 0 : i64, tpu.core_type = #tpu.core_type<tc>, window_params = [{transform_indices = @transform_0, window_bounds = array<i64: 16, 128>}, {transform_indices = @transform_1, window_bounds = array<i64: 16, 128>}, {transform_indices = @transform_2, window_bounds = array<i64: 8, 128>}, {transform_indices = @transform_3, window_bounds = array<i64: 8, 128>}]} {
    %c0_i32 = arith.constant 0 : i32
    %0 = arith.cmpi eq, %arg1, %c0_i32 : i32
    %1 = arith.extui %0 : i1 to i32
    %c0_i32_0 = arith.constant 0 : i32
    %2 = arith.cmpi ne, %1, %c0_i32_0 : i32
    scf.if %2 {
      %cst_18 = arith.constant 0.000000e+00 : f32
      %27 = vector.broadcast %cst_18 : f32 to vector<8x128xf32>
      %c0_19 = arith.constant 0 : index
      %c0_20 = arith.constant 0 : index
      %28 = vector.load %arg4[%c0_19, %c0_20] : memref<8x128xf32, #tpu.memory_space<vmem>>, vector<8x128xf32>
      tpu.vector_store %arg4[%c0_19, %c0_20], %27 {strides = array<i32>} : memref<8x128xf32, #tpu.memory_space<vmem>>, vector<8x128xf32>,
      %cst_21 = arith.constant 0.000000e+00 : f32
      %29 = vector.broadcast %cst_21 : f32 to vector<8x128xf32>
      %c0_22 = arith.constant 0 : index
      %c0_23 = arith.constant 0 : index
      %30 = vector.load %arg5[%c0_22, %c0_23] : memref<8x128xf32, #tpu.memory_space<vmem>>, vector<8x128xf32>
      tpu.vector_store %arg5[%c0_22, %c0_23], %29 {strides = array<i32>} : memref<8x128xf32, #tpu.memory_space<vmem>>, vector<8x128xf32>,
    } else {
    }
    %c0 = arith.constant 0 : index
    %c0_1 = arith.constant 0 : index
    %3 = vector.load %arg2[%c0, %c0_1] : memref<16x128xf32, #tpu.memory_space<vmem>>, vector<16x128xf32>
    %4 = math.log %3 : vector<16x128xf32>
    %cst = arith.constant 0.000000e+00 : f32
    %5 = vector.broadcast %cst : f32 to vector<16x128xf32>
    %6 = arith.subf %5, %4 : vector<16x128xf32>
    %cst_2 = arith.constant 1.000000e+02 : f32
    %7 = vector.broadcast %cst_2 : f32 to vector<16x128xf32>
    %8 = arith.minimumf %6, %7 : vector<16x128xf32>
    %c0_3 = arith.constant 0 : index
    %c0_4 = arith.constant 0 : index
    %9 = vector.load %arg4[%c0_3, %c0_4] : memref<8x128xf32, #tpu.memory_space<vmem>>, vector<8x128xf32>
    %10 = vector.shape_cast %8 : vector<16x128xf32> to vector<2x8x128xf32>
    %cst_5 = arith.constant dense<0.000000e+00> : vector<8x128xf32>
    %11 = vector.multi_reduction <add>, %10, %cst_5 [0] : vector<2x8x128xf32> to vector<8x128xf32>
    %12 = arith.addf %9, %11 : vector<8x128xf32>
    %c0_6 = arith.constant 0 : index
    %c0_7 = arith.constant 0 : index
    %13 = vector.load %arg4[%c0_6, %c0_7] : memref<8x128xf32, #tpu.memory_space<vmem>>, vector<8x128xf32>
    tpu.vector_store %arg4[%c0_6, %c0_7], %12 {strides = array<i32>} : memref<8x128xf32, #tpu.memory_space<vmem>>, vector<8x128xf32>,
    %c0_8 = arith.constant 0 : index
    %c0_9 = arith.constant 0 : index
    %14 = vector.load %arg3[%c0_8, %c0_9] : memref<16x128xf32, #tpu.memory_space<vmem>>, vector<16x128xf32>
    %cst_10 = arith.constant 1.000000e+00 : f32
    %15 = vector.broadcast %cst_10 : f32 to vector<16x128xf32>
    %16 = arith.subf %15, %14 : vector<16x128xf32>
    %17 = math.log %16 : vector<16x128xf32>
    %cst_11 = arith.constant 0.000000e+00 : f32
    %18 = vector.broadcast %cst_11 : f32 to vector<16x128xf32>
    %19 = arith.subf %18, %17 : vector<16x128xf32>
    %cst_12 = arith.constant 1.000000e+02 : f32
    %20 = vector.broadcast %cst_12 : f32 to vector<16x128xf32>
    %21 = arith.minimumf %19, %20 : vector<16x128xf32>
    %c0_13 = arith.constant 0 : index
    %c0_14 = arith.constant 0 : index
    %22 = vector.load %arg5[%c0_13, %c0_14] : memref<8x128xf32, #tpu.memory_space<vmem>>, vector<8x128xf32>
    %23 = vector.shape_cast %21 : vector<16x128xf32> to vector<2x8x128xf32>
    %cst_15 = arith.constant dense<0.000000e+00> : vector<8x128xf32>
    %24 = vector.multi_reduction <add>, %23, %cst_15 [0] : vector<2x8x128xf32> to vector<8x128xf32>
    %25 = arith.addf %22, %24 : vector<8x128xf32>
    %c0_16 = arith.constant 0 : index
    %c0_17 = arith.constant 0 : index
    %26 = vector.load %arg5[%c0_16, %c0_17] : memref<8x128xf32, #tpu.memory_space<vmem>>, vector<8x128xf32>
    tpu.vector_store %arg5[%c0_16, %c0_17], %25 {strides = array<i32>} : memref<8x128xf32, #tpu.memory_space<vmem>>, vector<8x128xf32>,
    return
  }
  func.func @transform_0(%arg0: i32, %arg1: i32) -> (i32, i32) {
    %c1_i32 = arith.constant 1 : i32
    %0 = arith.muli %arg0, %c1_i32 : i32
    %1 = arith.addi %0, %arg1 : i32
    %c0_i32 = arith.constant 0 : i32
    %2 = arith.minsi %1, %c0_i32 : i32
    %c0_i32_0 = arith.constant 0 : i32
    %c0_i32_1 = arith.constant 0 : i32
    return %2, %c0_i32_0 : i32, i32
  }
  func.func @transform_1(%arg0: i32, %arg1: i32) -> (i32, i32) {
    %c1_i32 = arith.constant 1 : i32
    %0 = arith.muli %arg0, %c1_i32 : i32
    %1 = arith.addi %0, %arg1 : i32
    %c0_i32 = arith.constant 0 : i32
    %2 = arith.minsi %1, %c0_i32 : i32
    %c0_i32_0 = arith.constant 0 : i32
    %c0_i32_1 = arith.constant 0 : i32
    return %2, %c0_i32_0 : i32, i32
  }
  func.func @transform_2(%arg0: i32, %arg1: i32) -> (i32, i32) {
    %c0_i32 = arith.constant 0 : i32
    %c0_i32_0 = arith.constant 0 : i32
    return %arg0, %c0_i32 : i32, i32
  }
  func.func @transform_3(%arg0: i32, %arg1: i32) -> (i32, i32) {
    %c0_i32 = arith.constant 0 : i32
    %c0_i32_0 = arith.constant 0 : i32
    return %arg0, %c0_i32 : i32, i32
  }
}

</mosaic_0001>

<llo_original>
// kernel: my_loss.1
$region0: #{my_loss.1}
  #allocation0 [shape = 'u32[]', space=smem, size = 0x4, offset = 0x4, fixed_abs, tag = 'smem constant byte address 0x4 - core index']
  #allocation1 [shape = 'u32[144,128]{1,0:T(1,128)}', space=vmem, size = 0x12000, scoped, tag = 'internal scratch']
  %s0 = inlined_call_operand.vmem [shape: f32[16,128], index: 0, kind: input, shape index: {}]
  %s1 = inlined_call_operand.vmem [shape: f32[16,128], index: 1, kind: input, shape index: {}]
  %s2 = inlined_call_operand.vmem [shape: f32[8,128], index: 2, kind: output, shape index: {0}]
  %s3 = inlined_call_operand.vmem [shape: f32[8,128], index: 3, kind: output, shape index: {1}]
  %4 = xla_tuple %s2, %s3
  %s5 = sld [smem:[#allocation0]]
  $region30: #{my_loss.1} parent=0
    _
  %s7 = ssub.s32 1, %s5
  %s8 = scalar_select 0, %s7, %s5
  // Predicated region
  $region2: #{my_loss.1} parent=0 // pred_check
    _
  $region3: #{my_loss.1} parent=0 // pred_check_branch
    %10 = sbr.rel (0) target = $region5
  $region4: #{my_loss.1} parent=0 // pred_region
    %s11 = sadd.s32 0, 0
    %p12 = scmp.lt.s32.totalorder %s11, 0
    %s13 = scalar_select %p12, %s11, 0
    %s14 = smul.u32 2, %s13
    %p15 = scmp.lt.s32.totalorder %s14, 1
    %s16 = scalar_select %p15, %s14, 1
    %s17 = smul.addr %s16, 8
    %s18 = scalar_lea.vmem %s0, %s17
    %s19 = sadd.s32 0, 0
    %p20 = scmp.lt.s32.totalorder %s19, 0
    %s21 = scalar_select %p20, %s19, 0
    %s22 = smul.u32 2, %s21
  $region5: #{my_loss.1} parent=0 // pred_fallthru
    _
  // Predicated region
  $region6: #{my_loss.1} parent=0 // pred_check
    _
  $region7: #{my_loss.1} parent=0 // pred_check_branch
    %24 = sbr.rel (0) target = $region9
  $region8: #{my_loss.1} parent=0 // pred_region
    %s25 = sadd.s32 0, 0
    %p26 = scmp.lt.s32.totalorder %s25, 0
    %s27 = scalar_select %p26, %s25, 0
    %s28 = smul.u32 2, %s27
    %p29 = scmp.lt.s32.totalorder %s28, 1
    %s30 = scalar_select %p29, %s28, 1
    %s31 = smul.addr %s30, 8
    %s32 = scalar_lea.vmem %s1, %s31
    %s33 = sadd.s32 0, 0
    %p34 = scmp.lt.s32.totalorder %s33, 0
    %s35 = scalar_select %p34, %s33, 0
    %s36 = smul.u32 2, %s35
  $region9: #{my_loss.1} parent=0 // pred_fallthru
    _
  %s37 = sadd.s32 0, 0
  %p38 = scmp.lt.s32.totalorder %s37, 0
  %s39 = scalar_select %p38, %s37, 0
  %s40 = smul.u32 2, %s39
  %p41 = scmp.lt.s32.totalorder %s40, 1
  %s42 = scalar_select %p41, %s40, 1
  %s43 = smul.addr %s42, 8
  %s44 = scalar_lea.vmem %s0, %s43
  %s45 = sadd.s32 0, 0
  %p46 = scmp.lt.s32.totalorder %s45, 0
  %s47 = scalar_select %p46, %s45, 0
  %s48 = smul.u32 2, %s47
  %p49 = scmp.lt.s32.totalorder %s48, 1
  %s50 = scalar_select %p49, %s48, 1
  %s51 = smul.addr %s50, 8
  %s52 = scalar_lea.vmem %s1, %s51
  %s53 = sadd.s32 0, 0
  %p54 = scmp.lt.s32.totalorder %s53, 0
  %s55 = scalar_select %p54, %s53, 0
  %s56 = smul.u32 2, %s55
  %p57 = scmp.lt.s32.totalorder %s56, 1
  %s58 = scalar_select %p57, %s56, 1
  %s59 = smul.addr %s58, 8
  %s60 = scalar_lea.vmem %s0, %s59
  %s61 = sadd.s32 0, 0
  %p62 = scmp.lt.s32.totalorder %s61, 0
  %s63 = scalar_select %p62, %s61, 0
  %s64 = smul.u32 2, %s63
  %s65 = sadd.s32 0, 0
  %p66 = scmp.lt.s32.totalorder %s65, 0
  %s67 = scalar_select %p66, %s65, 0
  %s68 = smul.u32 2, %s67
  %p69 = scmp.lt.s32.totalorder %s68, 1
  %s70 = scalar_select %p69, %s68, 1
  %s71 = smul.addr %s70, 8
  %s72 = scalar_lea.vmem %s1, %s71
  %s73 = sadd.s32 0, 0
  %p74 = scmp.lt.s32.totalorder %s73, 0
  %s75 = scalar_select %p74, %s73, 0
  %s76 = smul.u32 2, %s75
  %p77 = scmp.eq.s32.totalorder 0, 0
  // Predicated region
  $region10: #{my_loss.1} parent=0 // pred_check
    %p78 = pneg %p77
  $region11: #{my_loss.1} parent=0 // pred_check_branch
    %80 = sbr.rel (%p78) target = $region13
  $region12: #{my_loss.1} parent=0 // pred_region
    %81 = vst [vmem:[%s2] sm:$0xff] 0.0
    %82 = vst [vmem:[%s3] sm:$0xff] 0.0
  $region13: #{my_loss.1} parent=0 // pred_fallthru
    _
  %v83 = vld [vmem:[%s60] sm:$0xff]
  %v84 = vld [vmem:[%s60 + $0x8] sm:$0xff]
  %v85 = vlog2.pop %v83
  %v86 = vmul.f32 %v85, 0.6931472
  %v87 = vlog2.pop %v84
  %v88 = vmul.f32 %v87, 0.6931472
  %v89 = vsub.f32 0.0, %v86
  %v90 = vsub.f32 0.0, %v88
  %v91 = vmin.f32 %v89, 100.0
  %v92 = vmin.f32 %v90, 100.0
  %v93 = vld [vmem:[%s2] sm:$0xff]
  %v94 = vadd.f32 %v91, %v92
  %v95 = vadd.f32 %v93, %v94
  %96 = vst [vmem:[%s2] sm:$0xff] %v95
  %v97 = vld [vmem:[%s72] sm:$0xff]
  %v98 = vld [vmem:[%s72 + $0x8] sm:$0xff]
  %v99 = vsub.f32 1.0, %v97
  %v100 = vsub.f32 1.0, %v98
  %v101 = vlog2.pop %v99
  %v102 = vmul.f32 %v101, 0.6931472
  %v103 = vlog2.pop %v100
  %v104 = vmul.f32 %v103, 0.6931472
  %v105 = vsub.f32 0.0, %v102
  %v106 = vsub.f32 0.0, %v104
  %v107 = vmin.f32 %v105, 100.0
  %v108 = vmin.f32 %v106, 100.0
  %v109 = vld [vmem:[%s3] sm:$0xff]
  %v110 = vadd.f32 %v107, %v108
  %v111 = vadd.f32 %v109, %v110
  %112 = vst [vmem:[%s3] sm:$0xff] %v111
  // Predicated region
  $region14: #{my_loss.1} parent=0 // pred_check
    _
  $region15: #{my_loss.1} parent=0 // pred_check_branch
    %114 = sbr.rel (0) target = $region17
  $region16: #{my_loss.1} parent=0 // pred_region
    _
  $region17: #{my_loss.1} parent=0 // pred_fallthru
    _
  // Predicated region
  $region18: #{my_loss.1} parent=0 // pred_check
    _
  $region19: #{my_loss.1} parent=0 // pred_check_branch
    %116 = sbr.rel (0) target = $region21
  $region20: #{my_loss.1} parent=0 // pred_region
    _
  $region21: #{my_loss.1} parent=0 // pred_fallthru
    _
  // Predicated region
  $region22: #{my_loss.1} parent=0 // pred_check
    _
  $region23: #{my_loss.1} parent=0 // pred_check_branch
    %118 = sbr.rel (0) target = $region25
  $region24: #{my_loss.1} parent=0 // pred_region
    _
  $region25: #{my_loss.1} parent=0 // pred_fallthru
    _
  // Predicated region
  $region26: #{my_loss.1} parent=0 // pred_check
    _
  $region27: #{my_loss.1} parent=0 // pred_check_branch
    %120 = sbr.rel (0) target = $region29
  $region28: #{my_loss.1} parent=0 // pred_region
    _
  $region29: #{my_loss.1} parent=0 // pred_fallthru
    _

</llo_original>
